<compile_context>
chip_gen: v7x
topology: tpu7x:2x2x1
jax: 0.10.0
libtpu: 0.0.40
codegen_flags: <defaults>
</compile_context>

<pallas_src>
import functools

import jax
import jax.numpy as jnp
import numpy as np
from jax.experimental import pallas as pl
from jax.experimental.pallas import tpu as pltpu


def _round_up(v, m):
    return (v + m - 1) // m * m


def _pnn_fused_kernel(x_ref, w1t_ref, w2rt_ref, b_ref, o_ref, *,
                      num_fields, embedding_dim, num_layers, num_shifts,
                      matmul_dtype):
    """All dnn_layers for one batch tile, in transposed (feature, batch) layout.

    x_ref   : (D, tb)            activations for this tile (matmul dtype)
    w1t_ref : (L, H, D)          per-layer linear weight, transposed
    w2rt_ref: (L, H, NK*F)       per-layer folded pairwise weight, transposed
    b_ref   : (L, H, 1)          per-layer bias (f32)
    o_ref   : (H, tb)            output tile
    """
    f, e = num_fields, embedding_dim
    d = f * e
    md = matmul_dtype
    tb = x_ref.shape[1]

    act_mm = x_ref[...]                       # (D, tb) in matmul dtype (no cast on layer 0)
    act32 = act_mm.astype(jnp.float32)        # f32 carry for the quadratic term / ReLU

    for layer in range(num_layers):
        # ---- linear term on the MXU --------------------------------------
        y = jnp.dot(w1t_ref[layer], act_mm,
                    preferred_element_type=jnp.float32)        # (H, tb) f32

        # ---- pairwise-interaction term -----------------------------------
        # gram[b, i, (i+k)%F] for k = 1..F//2 covers every unordered pair
        # exactly once (weight 0.5 on both sides of the k=F/2 diagonal when F
        # is even -- folded into w2rt on the host).  Shifts are sublane slices
        # at multiples of E (8/16-aligned); products + E-group reductions run
        # on the VPU/XLU and co-issue under the MXU dots.
        g_parts = []
        for k in range(1, num_shifts + 1):
            s = k * e
            lo = act32[:d - s, :] * act32[s:, :]               # rows 0 .. D-s-1
            hi = act32[d - s:, :] * act32[:s, :]               # rows D-s .. D-1 (wrap)
            prod = jnp.concatenate([lo, hi], axis=0)           # (D, tb) f32
            # reduce each contiguous group of E sublanes -> (F, tb)
            g_parts.append(jnp.sum(prod.reshape(f, e, tb), axis=1))
        g_all = jnp.concatenate(g_parts, axis=0).astype(md)    # (NK*F, tb)

        y = y + jnp.dot(w2rt_ref[layer], g_all,
                        preferred_element_type=jnp.float32)    # accumulate 2nd dot
        y = y + b_ref[layer]                                   # (H, 1) f32 bias
        act32 = jnp.maximum(y, 0.0)                            # ReLU in f32
        act_mm = act32.astype(md)

    o_ref[...] = act_mm.astype(o_ref.dtype)


def _prep_weights(params, num_fields, embedding_dim, matmul_dtype):
    """Host-side weight prep.

    params[l] = (w1: (D, H), w2: (P, H), b: (1, H)) with
      D = F*E, P = F*(F-1)/2 (pairs in row-major upper-triangle order,
      matching InnerProductInteraction), and y = x@w1 + ip@w2 + b.

    Builds, per layer:
      w1t  (H, D)        : w1 transposed
      w2rt (H, NK*F)     : folded pairwise weight; row block k-1 holds
                           c_k * w2[pair(i, (i+k)%F)] for i = 0..F-1, with
                           c_k = 0.5 iff F even and k == F/2 (exact in bf16)
      bias (H, 1)        : f32
    """
    f, e = num_fields, embedding_dim
    d = f * e
    p = f * (f - 1) // 2
    nk = f // 2

    pair_idx = np.zeros((f, f), np.int64)
    iu, ju = np.triu_indices(f, k=1)                 # row-major (i<j) pair order
    pair_idx[iu, ju] = np.arange(p)
    pair_idx[ju, iu] = np.arange(p)

    w1t_l, w2rt_l, b_l = [], [], []
    for (w1, w2, b) in params:
        h = w1.shape[1]
        assert w1.shape == (d, h) and w2.shape == (p, h) and b.shape == (1, h)
        w1t_l.append(jnp.asarray(w1, jnp.float32).T)                 # (H, D)
        rows = []
        for k in range(1, nk + 1):
            c = 0.5 if (f % 2 == 0 and k == nk) else 1.0
            idx_k = pair_idx[np.arange(f), (np.arange(f) + k) % f]   # (F,)
            rows.append(c * jnp.take(jnp.asarray(w2, jnp.float32),
                                     jnp.asarray(idx_k), axis=0))    # (F, H)
        w2rt_l.append(jnp.concatenate(rows, axis=0).T)               # (H, NK*F)
        b_l.append(jnp.asarray(b, jnp.float32).T)                    # (H, 1)

    w1t = jnp.stack(w1t_l).astype(matmul_dtype)          # (L, H, D)
    w2rt = jnp.stack(w2rt_l).astype(matmul_dtype)        # (L, H, NK*F)
    bias = jnp.stack(b_l)                                 # (L, H, 1) f32
    return w1t, w2rt, bias


def pnn_mlp_block(x, params, *, num_fields, embedding_dim,
                  matmul_dtype=jnp.bfloat16, tb=None):
    """Fused PNN_MLP_Block forward: all dnn_layers in one Pallas TPU kernel.

    x: (B, D) with D = num_fields * embedding_dim.  Returns (B, D).
    matmul_dtype=bf16 by default (MXU native on v5e/v6e/v7x); accumulation,
    bias and ReLU are always f32.
    """
    bsz, d = x.shape
    f, e = num_fields, embedding_dim
    assert d == f * e, "input_dim must equal num_fields * embedding_dim"
    assert f >= 2, "need at least two fields for pairwise interactions"
    num_layers = len(params)
    h = params[0][0].shape[1]
    assert h == d, "PNN_MLP_Block uses hidden_units = input_dim for every layer"
    nk = f // 2

    # Batch tile: batch lives on the lane axis, so tiles are multiples of 128.
    # Never collapse to a single grid step for large batches: pad the batch up
    # to a multiple of tb instead (padded columns are sliced off at the end).
    # On v6e/v5e (128 MiB VMEM, 1 TC) tb=512 is a good choice for very large
    # batches; 256 keeps >=4 steps/core on v7x and fits its 64 MiB VMEM easily.
    if tb is None:
        tb = 256
    tb = min(tb, _round_up(bsz, 128))
    b_pad = _round_up(bsz, tb)
    grid = (b_pad // tb,)

    w1t, w2rt, bias = _prep_weights(params, f, e, matmul_dtype)

    # Transposed activation layout: (D, B) with batch on lanes (lane-dense,
    # unmasked loads/stores) and features on sublanes (8/16-aligned slices for
    # the field-shift products).
    xt = jnp.transpose(x).astype(matmul_dtype)
    if b_pad != bsz:
        xt = jnp.pad(xt, ((0, 0), (0, b_pad - bsz)))

    kernel = functools.partial(
        _pnn_fused_kernel, num_fields=f, embedding_dim=e,
        num_layers=num_layers, num_shifts=nk, matmul_dtype=matmul_dtype)

    itemsize = jnp.dtype(matmul_dtype).itemsize
    cost = pl.CostEstimate(
        flops=int(num_layers * (2 * b_pad * h * d            # W1 dot
                                + 2 * b_pad * h * nk * f      # W2r dot
                                + 2 * b_pad * d * nk)),       # products + reduce
        transcendentals=0,
        bytes_accessed=int(b_pad * (d + h) * itemsize
                           + (w1t.size + w2rt.size) * itemsize + bias.size * 4),
    )

    out_t = pl.pallas_call(
        kernel,
        out_shape=jax.ShapeDtypeStruct((h, b_pad), matmul_dtype),
        grid_spec=pltpu.PrefetchScalarGridSpec(
            num_scalar_prefetch=0,
            grid=grid,
            in_specs=[
                pl.BlockSpec((d, tb), lambda i: (0, i)),
                # Per-layer weights / biases: small, constant-index blocks ->
                # VMEM-resident for the whole grid (could be pl.Buffered(1) to
                # drop the second buffer, but the slab is only ~2 MiB in bf16).
                pl.BlockSpec((num_layers, h, d), lambda i: (0, 0, 0)),
                pl.BlockSpec((num_layers, h, nk * f), lambda i: (0, 0, 0)),
                pl.BlockSpec((num_layers, h, 1), lambda i: (0, 0, 0)),
            ],
            out_specs=pl.BlockSpec((h, tb), lambda i: (0, i)),
        ),
        compiler_params=pltpu.CompilerParams(
            dimension_semantics=("parallel",),
            vmem_limit_bytes=32 * 1024 * 1024,
        ),
        cost_estimate=cost,
    )(xt, w1t, w2rt, bias)

    return jnp.transpose(out_t[:, :bsz])


def pnn_mlp_block_reference(x, params, *, num_fields, embedding_dim):
    """Pure-JAX reference (module semantics) for correctness checking."""
    bsz = x.shape[0]
    iu, ju = np.triu_indices(num_fields, k=1)
    hp = jax.lax.Precision.HIGHEST
    for (w1, w2, b) in params:
        emb = x.reshape(bsz, num_fields, embedding_dim)
        gram = jnp.einsum("bfe,bge->bfg", emb, emb, precision=hp)
        ip = gram[:, iu, ju]                                # row-major upper-tri
        cat = jnp.concatenate([x, ip], axis=-1)
        w = jnp.concatenate([w1, w2], axis=0)
        x = jax.nn.relu(jnp.dot(cat, w, precision=hp) + b[0])
    return x


def _make_inputs(key, batch, num_fields, embedding_dim, dnn_layers=3):
    d = num_fields * embedding_dim
    p = num_fields * (num_fields - 1) // 2
    kx, *kws = jax.random.split(key, 1 + 2 * dnn_layers)
    x = jax.random.normal(kx, (batch, d), dtype=jnp.float32)
    # Scale chosen so activations stay O(1) through the quadratic interactions.
    scale = 1.0 / np.sqrt(d + p * embedding_dim)
    params = []
    for i in range(dnn_layers):
        w = scale * jax.random.normal(kws[2 * i], (d + p, d), dtype=jnp.float32)
        b = scale * jax.random.normal(kws[2 * i + 1], (1, d), dtype=jnp.float32)
        params.append((w[:d], w[d:], b))
    return x, params


if __name__ == "__main__":
    key = jax.random.PRNGKey(0)
    k_a, k_b = jax.random.split(key)

    # --- Config A: small, f32 path, exercises batch padding (48 -> 128) ------
    f_a, e_a, b_a = 4, 8, 48
    x_a, p_a = _make_inputs(k_a, b_a, f_a, e_a)
    ref_a = pnn_mlp_block_reference(x_a, p_a, num_fields=f_a, embedding_dim=e_a)
    out_a = jax.block_until_ready(
        pnn_mlp_block(x_a, p_a, num_fields=f_a, embedding_dim=e_a,
                      matmul_dtype=jnp.float32))
    assert out_a.shape == ref_a.shape
    err_a = float(jnp.max(jnp.abs(out_a - ref_a)))
    assert bool(jnp.allclose(out_a, ref_a, atol=2e-2, rtol=2e-2)), \
        f"config A (f32) mismatch vs reference, max|err|={err_a}"

    # --- Config B: module-default fields (24 x 16), bf16 default path --------
    # batch 500 -> padded to 512 -> 2 grid steps (pipelined / core-shardable).
    f_b, e_b, b_b = 24, 16, 500
    x_b, p_b = _make_inputs(k_b, b_b, f_b, e_b)
    ref_b = pnn_mlp_block_reference(x_b, p_b, num_fields=f_b, embedding_dim=e_b)
    out_b = jax.block_until_ready(
        pnn_mlp_block(x_b, p_b, num_fields=f_b, embedding_dim=e_b))  # bf16 default
    err_b = float(jnp.max(jnp.abs(out_b.astype(jnp.float32) - ref_b)))
    # bf16 operands square the rounding error through the quadratic term over
    # 3 layers; semantic bugs would still produce O(1) errors.
    assert bool(jnp.allclose(out_b.astype(jnp.float32), ref_b,
                             atol=2e-1, rtol=2e-1)), \
        f"config B (bf16) mismatch vs reference, max|err|={err_b}"

    print("KERNEL_OK")
</pallas_src>

<mosaic_0001>
module attributes {stable_mosaic.version = 11 : i64} {
  func.func @_pnn_fused_kernel(%arg0: i32, %arg1: memref<32x128xf32, #tpu.memory_space<vmem>>, %arg2: memref<3x32x32xf32, #tpu.memory_space<vmem>>, %arg3: memref<3x32x8xf32, #tpu.memory_space<vmem>>, %arg4: memref<3x32x1xf32, #tpu.memory_space<vmem>>, %arg5: memref<32x128xf32, #tpu.memory_space<vmem>>) attributes {dimension_semantics = [#tpu.dimension_semantics<parallel>], iteration_bounds = array<i64: 1>, scalar_prefetch = 0 : i64, scratch_operands = 0 : i64, tpu.core_type = #tpu.core_type<tc>, window_params = [{transform_indices = @transform_0, window_bounds = array<i64: 32, 128>}, {pipeline_mode = #tpu.pipeline_mode<synchronous>, transform_indices = @transform_1, window_bounds = array<i64: 3, 32, 32>}, {pipeline_mode = #tpu.pipeline_mode<synchronous>, transform_indices = @transform_2, window_bounds = array<i64: 3, 32, 8>}, {pipeline_mode = #tpu.pipeline_mode<synchronous>, transform_indices = @transform_3, window_bounds = array<i64: 3, 32, 1>}, {transform_indices = @transform_4, window_bounds = array<i64: 32, 128>}]} {
    %c0 = arith.constant 0 : index
    %c0_0 = arith.constant 0 : index
    %0 = vector.load %arg1[%c0, %c0_0] : memref<32x128xf32, #tpu.memory_space<vmem>>, vector<32x128xf32>
    %c0_1 = arith.constant 0 : index
    %c0_2 = arith.constant 0 : index
    %c0_3 = arith.constant 0 : index
    %1 = vector.load %arg2[%c0_1, %c0_2, %c0_3] : memref<3x32x32xf32, #tpu.memory_space<vmem>>, vector<1x32x32xf32>
    %2 = vector.shape_cast %1 : vector<1x32x32xf32> to vector<32x32xf32>
    %cst = arith.constant dense<0.000000e+00> : vector<32x128xf32>
    %3 = tpu.matmul %2, %0, %cst {dimension_numbers = #tpu.dot_dimension_numbers<[1], [0], [0], [1], [0, 0, 1, 1], [], []>} : vector<32x32xf32>, vector<32x128xf32>, vector<32x128xf32> -> vector<32x128xf32>
    %4 = vector.extract_strided_slice %0 {offsets = [0, 0], sizes = [24, 128], strides = [1, 1]} : vector<32x128xf32> to vector<24x128xf32>
    %5 = vector.extract_strided_slice %0 {offsets = [8, 0], sizes = [24, 128], strides = [1, 1]} : vector<32x128xf32> to vector<24x128xf32>
    %6 = arith.mulf %4, %5 : vector<24x128xf32>
    %7 = vector.extract_strided_slice %0 {offsets = [24, 0], sizes = [8, 128], strides = [1, 1]} : vector<32x128xf32> to vector<8x128xf32>
    %8 = vector.extract_strided_slice %0 {offsets = [0, 0], sizes = [8, 128], strides = [1, 1]} : vector<32x128xf32> to vector<8x128xf32>
    %9 = arith.mulf %7, %8 : vector<8x128xf32>
    %10 = tpu.concatenate %6, %9 in 0 : vector<24x128xf32>, vector<8x128xf32> -> vector<32x128xf32>
    %11 = vector.shape_cast %10 : vector<32x128xf32> to vector<4x8x128xf32>
    %cst_4 = arith.constant dense<0.000000e+00> : vector<4x128xf32>
    %12 = vector.multi_reduction <add>, %11, %cst_4 [1] : vector<4x8x128xf32> to vector<4x128xf32>
    %13 = vector.extract_strided_slice %0 {offsets = [0, 0], sizes = [16, 128], strides = [1, 1]} : vector<32x128xf32> to vector<16x128xf32>
    %14 = vector.extract_strided_slice %0 {offsets = [16, 0], sizes = [16, 128], strides = [1, 1]} : vector<32x128xf32> to vector<16x128xf32>
    %15 = arith.mulf %13, %14 : vector<16x128xf32>
    %16 = vector.extract_strided_slice %0 {offsets = [16, 0], sizes = [16, 128], strides = [1, 1]} : vector<32x128xf32> to vector<16x128xf32>
    %17 = vector.extract_strided_slice %0 {offsets = [0, 0], sizes = [16, 128], strides = [1, 1]} : vector<32x128xf32> to vector<16x128xf32>
    %18 = arith.mulf %16, %17 : vector<16x128xf32>
    %19 = tpu.concatenate %15, %18 in 0 : vector<16x128xf32>, vector<16x128xf32> -> vector<32x128xf32>
    %20 = vector.shape_cast %19 : vector<32x128xf32> to vector<4x8x128xf32>
    %cst_5 = arith.constant dense<0.000000e+00> : vector<4x128xf32>
    %21 = vector.multi_reduction <add>, %20, %cst_5 [1] : vector<4x8x128xf32> to vector<4x128xf32>
    %22 = tpu.concatenate %12, %21 in 0 : vector<4x128xf32>, vector<4x128xf32> -> vector<8x128xf32>
    %c0_6 = arith.constant 0 : index
    %c0_7 = arith.constant 0 : index
    %c0_8 = arith.constant 0 : index
    %23 = vector.load %arg3[%c0_6, %c0_7, %c0_8] : memref<3x32x8xf32, #tpu.memory_space<vmem>>, vector<1x32x8xf32>
    %24 = vector.shape_cast %23 : vector<1x32x8xf32> to vector<32x8xf32>
    %cst_9 = arith.constant dense<0.000000e+00> : vector<32x128xf32>
    %25 = tpu.matmul %24, %22, %cst_9 {dimension_numbers = #tpu.dot_dimension_numbers<[1], [0], [0], [1], [0, 0, 1, 1], [], []>} : vector<32x8xf32>, vector<8x128xf32>, vector<32x128xf32> -> vector<32x128xf32>
    %26 = arith.addf %3, %25 : vector<32x128xf32>
    %c0_10 = arith.constant 0 : index
    %c0_11 = arith.constant 0 : index
    %c0_12 = arith.constant 0 : index
    %27 = vector.load %arg4[%c0_10, %c0_11, %c0_12] : memref<3x32x1xf32, #tpu.memory_space<vmem>>, vector<1x32x1xf32>
    %28 = vector.shape_cast %27 : vector<1x32x1xf32> to vector<32x1xf32>
    %29 = vector.broadcast %28 : vector<32x1xf32> to vector<32x128xf32>
    %30 = arith.addf %26, %29 : vector<32x128xf32>
    %cst_13 = arith.constant 0.000000e+00 : f32
    %31 = vector.broadcast %cst_13 : f32 to vector<32x128xf32>
    %32 = arith.maximumf %30, %31 : vector<32x128xf32>
    %c1 = arith.constant 1 : index
    %c0_14 = arith.constant 0 : index
    %c0_15 = arith.constant 0 : index
    %33 = vector.load %arg2[%c1, %c0_14, %c0_15] : memref<3x32x32xf32, #tpu.memory_space<vmem>>, vector<1x32x32xf32>
    %34 = vector.shape_cast %33 : vector<1x32x32xf32> to vector<32x32xf32>
    %cst_16 = arith.constant dense<0.000000e+00> : vector<32x128xf32>
    %35 = tpu.matmul %34, %32, %cst_16 {dimension_numbers = #tpu.dot_dimension_numbers<[1], [0], [0], [1], [0, 0, 1, 1], [], []>} : vector<32x32xf32>, vector<32x128xf32>, vector<32x128xf32> -> vector<32x128xf32>
    %36 = vector.extract_strided_slice %32 {offsets = [0, 0], sizes = [24, 128], strides = [1, 1]} : vector<32x128xf32> to vector<24x128xf32>
    %37 = vector.extract_strided_slice %32 {offsets = [8, 0], sizes = [24, 128], strides = [1, 1]} : vector<32x128xf32> to vector<24x128xf32>
    %38 = arith.mulf %36, %37 : vector<24x128xf32>
    %39 = vector.extract_strided_slice %32 {offsets = [24, 0], sizes = [8, 128], strides = [1, 1]} : vector<32x128xf32> to vector<8x128xf32>
    %40 = vector.extract_strided_slice %32 {offsets = [0, 0], sizes = [8, 128], strides = [1, 1]} : vector<32x128xf32> to vector<8x128xf32>
    %41 = arith.mulf %39, %40 : vector<8x128xf32>
    %42 = tpu.concatenate %38, %41 in 0 : vector<24x128xf32>, vector<8x128xf32> -> vector<32x128xf32>
    %43 = vector.shape_cast %42 : vector<32x128xf32> to vector<4x8x128xf32>
    %cst_17 = arith.constant dense<0.000000e+00> : vector<4x128xf32>
    %44 = vector.multi_reduction <add>, %43, %cst_17 [1] : vector<4x8x128xf32> to vector<4x128xf32>
    %45 = vector.extract_strided_slice %32 {offsets = [0, 0], sizes = [16, 128], strides = [1, 1]} : vector<32x128xf32> to vector<16x128xf32>
    %46 = vector.extract_strided_slice %32 {offsets = [16, 0], sizes = [16, 128], strides = [1, 1]} : vector<32x128xf32> to vector<16x128xf32>
    %47 = arith.mulf %45, %46 : vector<16x128xf32>
    %48 = vector.extract_strided_slice %32 {offsets = [16, 0], sizes = [16, 128], strides = [1, 1]} : vector<32x128xf32> to vector<16x128xf32>
    %49 = vector.extract_strided_slice %32 {offsets = [0, 0], sizes = [16, 128], strides = [1, 1]} : vector<32x128xf32> to vector<16x128xf32>
    %50 = arith.mulf %48, %49 : vector<16x128xf32>
    %51 = tpu.concatenate %47, %50 in 0 : vector<16x128xf32>, vector<16x128xf32> -> vector<32x128xf32>
    %52 = vector.shape_cast %51 : vector<32x128xf32> to vector<4x8x128xf32>
    %cst_18 = arith.constant dense<0.000000e+00> : vector<4x128xf32>
    %53 = vector.multi_reduction <add>, %52, %cst_18 [1] : vector<4x8x128xf32> to vector<4x128xf32>
    %54 = tpu.concatenate %44, %53 in 0 : vector<4x128xf32>, vector<4x128xf32> -> vector<8x128xf32>
    %c1_19 = arith.constant 1 : index
    %c0_20 = arith.constant 0 : index
    %c0_21 = arith.constant 0 : index
    %55 = vector.load %arg3[%c1_19, %c0_20, %c0_21] : memref<3x32x8xf32, #tpu.memory_space<vmem>>, vector<1x32x8xf32>
    %56 = vector.shape_cast %55 : vector<1x32x8xf32> to vector<32x8xf32>
    %cst_22 = arith.constant dense<0.000000e+00> : vector<32x128xf32>
    %57 = tpu.matmul %56, %54, %cst_22 {dimension_numbers = #tpu.dot_dimension_numbers<[1], [0], [0], [1], [0, 0, 1, 1], [], []>} : vector<32x8xf32>, vector<8x128xf32>, vector<32x128xf32> -> vector<32x128xf32>
    %58 = arith.addf %35, %57 : vector<32x128xf32>
    %c1_23 = arith.constant 1 : index
    %c0_24 = arith.constant 0 : index
    %c0_25 = arith.constant 0 : index
    %59 = vector.load %arg4[%c1_23, %c0_24, %c0_25] : memref<3x32x1xf32, #tpu.memory_space<vmem>>, vector<1x32x1xf32>
    %60 = vector.shape_cast %59 : vector<1x32x1xf32> to vector<32x1xf32>
    %61 = vector.broadcast %60 : vector<32x1xf32> to vector<32x128xf32>
    %62 = arith.addf %58, %61 : vector<32x128xf32>
    %cst_26 = arith.constant 0.000000e+00 : f32
    %63 = vector.broadcast %cst_26 : f32 to vector<32x128xf32>
    %64 = arith.maximumf %62, %63 : vector<32x128xf32>
    %c2 = arith.constant 2 : index
    %c0_27 = arith.constant 0 : index
    %c0_28 = arith.constant 0 : index
    %65 = vector.load %arg2[%c2, %c0_27, %c0_28] : memref<3x32x32xf32, #tpu.memory_space<vmem>>, vector<1x32x32xf32>
    %66 = vector.shape_cast %65 : vector<1x32x32xf32> to vector<32x32xf32>
    %cst_29 = arith.constant dense<0.000000e+00> : vector<32x128xf32>
    %67 = tpu.matmul %66, %64, %cst_29 {dimension_numbers = #tpu.dot_dimension_numbers<[1], [0], [0], [1], [0, 0, 1, 1], [], []>} : vector<32x32xf32>, vector<32x128xf32>, vector<32x128xf32> -> vector<32x128xf32>
    %68 = vector.extract_strided_slice %64 {offsets = [0, 0], sizes = [24, 128], strides = [1, 1]} : vector<32x128xf32> to vector<24x128xf32>
    %69 = vector.extract_strided_slice %64 {offsets = [8, 0], sizes = [24, 128], strides = [1, 1]} : vector<32x128xf32> to vector<24x128xf32>
    %70 = arith.mulf %68, %69 : vector<24x128xf32>
    %71 = vector.extract_strided_slice %64 {offsets = [24, 0], sizes = [8, 128], strides = [1, 1]} : vector<32x128xf32> to vector<8x128xf32>
    %72 = vector.extract_strided_slice %64 {offsets = [0, 0], sizes = [8, 128], strides = [1, 1]} : vector<32x128xf32> to vector<8x128xf32>
    %73 = arith.mulf %71, %72 : vector<8x128xf32>
    %74 = tpu.concatenate %70, %73 in 0 : vector<24x128xf32>, vector<8x128xf32> -> vector<32x128xf32>
    %75 = vector.shape_cast %74 : vector<32x128xf32> to vector<4x8x128xf32>
    %cst_30 = arith.constant dense<0.000000e+00> : vector<4x128xf32>
    %76 = vector.multi_reduction <add>, %75, %cst_30 [1] : vector<4x8x128xf32> to vector<4x128xf32>
    %77 = vector.extract_strided_slice %64 {offsets = [0, 0], sizes = [16, 128], strides = [1, 1]} : vector<32x128xf32> to vector<16x128xf32>
    %78 = vector.extract_strided_slice %64 {offsets = [16, 0], sizes = [16, 128], strides = [1, 1]} : vector<32x128xf32> to vector<16x128xf32>
    %79 = arith.mulf %77, %78 : vector<16x128xf32>
    %80 = vector.extract_strided_slice %64 {offsets = [16, 0], sizes = [16, 128], strides = [1, 1]} : vector<32x128xf32> to vector<16x128xf32>
    %81 = vector.extract_strided_slice %64 {offsets = [0, 0], sizes = [16, 128], strides = [1, 1]} : vector<32x128xf32> to vector<16x128xf32>
    %82 = arith.mulf %80, %81 : vector<16x128xf32>
    %83 = tpu.concatenate %79, %82 in 0 : vector<16x128xf32>, vector<16x128xf32> -> vector<32x128xf32>
    %84 = vector.shape_cast %83 : vector<32x128xf32> to vector<4x8x128xf32>
    %cst_31 = arith.constant dense<0.000000e+00> : vector<4x128xf32>
    %85 = vector.multi_reduction <add>, %84, %cst_31 [1] : vector<4x8x128xf32> to vector<4x128xf32>
    %86 = tpu.concatenate %76, %85 in 0 : vector<4x128xf32>, vector<4x128xf32> -> vector<8x128xf32>
    %c2_32 = arith.constant 2 : index
    %c0_33 = arith.constant 0 : index
    %c0_34 = arith.constant 0 : index
    %87 = vector.load %arg3[%c2_32, %c0_33, %c0_34] : memref<3x32x8xf32, #tpu.memory_space<vmem>>, vector<1x32x8xf32>
    %88 = vector.shape_cast %87 : vector<1x32x8xf32> to vector<32x8xf32>
    %cst_35 = arith.constant dense<0.000000e+00> : vector<32x128xf32>
    %89 = tpu.matmul %88, %86, %cst_35 {dimension_numbers = #tpu.dot_dimension_numbers<[1], [0], [0], [1], [0, 0, 1, 1], [], []>} : vector<32x8xf32>, vector<8x128xf32>, vector<32x128xf32> -> vector<32x128xf32>
    %90 = arith.addf %67, %89 : vector<32x128xf32>
    %c2_36 = arith.constant 2 : index
    %c0_37 = arith.constant 0 : index
    %c0_38 = arith.constant 0 : index
    %91 = vector.load %arg4[%c2_36, %c0_37, %c0_38] : memref<3x32x1xf32, #tpu.memory_space<vmem>>, vector<1x32x1xf32>
    %92 = vector.shape_cast %91 : vector<1x32x1xf32> to vector<32x1xf32>
    %93 = vector.broadcast %92 : vector<32x1xf32> to vector<32x128xf32>
    %94 = arith.addf %90, %93 : vector<32x128xf32>
    %cst_39 = arith.constant 0.000000e+00 : f32
    %95 = vector.broadcast %cst_39 : f32 to vector<32x128xf32>
    %96 = arith.maximumf %94, %95 : vector<32x128xf32>
    %c0_40 = arith.constant 0 : index
    %c0_41 = arith.constant 0 : index
    %97 = vector.load %arg5[%c0_40, %c0_41] : memref<32x128xf32, #tpu.memory_space<vmem>>, vector<32x128xf32>
    tpu.vector_store %arg5[%c0_40, %c0_41], %96 {strides = array<i32>} : memref<32x128xf32, #tpu.memory_space<vmem>>, vector<32x128xf32>,
    return
  }
  func.func @transform_0(%arg0: i32) -> (i32, i32) {
    %c0_i32 = arith.constant 0 : i32
    %c0_i32_0 = arith.constant 0 : i32
    return %c0_i32, %arg0 : i32, i32
  }
  func.func @transform_1(%arg0: i32) -> (i32, i32, i32) {
    %c0_i32 = arith.constant 0 : i32
    %c0_i32_0 = arith.constant 0 : i32
    %c0_i32_1 = arith.constant 0 : i32
    %c0_i32_2 = arith.constant 0 : i32
    return %c0_i32, %c0_i32_0, %c0_i32_1 : i32, i32, i32
  }
  func.func @transform_2(%arg0: i32) -> (i32, i32, i32) {
    %c0_i32 = arith.constant 0 : i32
    %c0_i32_0 = arith.constant 0 : i32
    %c0_i32_1 = arith.constant 0 : i32
    %c0_i32_2 = arith.constant 0 : i32
    return %c0_i32, %c0_i32_0, %c0_i32_1 : i32, i32, i32
  }
  func.func @transform_3(%arg0: i32) -> (i32, i32, i32) {
    %c0_i32 = arith.constant 0 : i32
    %c0_i32_0 = arith.constant 0 : i32
    %c0_i32_1 = arith.constant 0 : i32
    %c0_i32_2 = arith.constant 0 : i32
    return %c0_i32, %c0_i32_0, %c0_i32_1 : i32, i32, i32
  }
  func.func @transform_4(%arg0: i32) -> (i32, i32) {
    %c0_i32 = arith.constant 0 : i32
    %c0_i32_0 = arith.constant 0 : i32
    return %c0_i32, %arg0 : i32, i32
  }
}

</mosaic_0001>

<llo_original>
// kernel: tpu_custom_call.1
$region0: #{tpu_custom_call.1}
  #allocation0 [shape = 'u32[]', space=smem, size = 0x4, offset = 0x4, fixed_abs, tag = 'smem constant byte address 0x4 - core index']
  #allocation1 [shape = 'u32[144,128]{1,0:T(1,128)}', space=vmem, size = 0x12000, scoped, tag = 'internal scratch']
  %s0 = inlined_call_operand.vmem [shape: f32[32,128], index: 0, kind: input, shape index: {}]
  %s1 = inlined_call_operand.vmem [shape: f32[3,32,32], index: 1, kind: input, shape index: {}]
  %s2 = inlined_call_operand.vmem [shape: f32[3,32,8], index: 2, kind: input, shape index: {}]
  %s3 = inlined_call_operand.vmem [shape: f32[3,32,1], index: 3, kind: input, shape index: {}]
  %s4 = inlined_call_operand.hbm [shape: f32[32,128], index: 4, kind: output, shape index: {}]
  %s5 = sld [smem:[#allocation0]]
  $region26: #{tpu_custom_call.1} parent=0
    _
  %s7 = ssub.s32 1, %s5
  %s8 = scalar_select 0, %s7, %s5
  $region1: #{tpu_custom_call.1} parent=0
    #allocation2 [shape = 'u8[16384]{0}', space=vmem, size = 0x4000, scoped, tag = 'output window, operand 0, single buffered']
    #allocation3 [shape = 's32[1]{0}', space=sflag, size = 0x4, scoped, tag = 'scoped memory for tpu_custom_call.1']
    %9 = vsyncpa [#allocation3], 0
    // Predicated region
    $region2: #{tpu_custom_call.1} parent=1 // pred_check
      _
    $region3: #{tpu_custom_call.1} parent=1 // pred_check_branch
      %11 = sbr.rel (0) target = $region5
    $region4: #{tpu_custom_call.1} parent=1 // pred_region
      _
    $region5: #{tpu_custom_call.1} parent=1 // pred_fallthru
      _
    // Predicated region
    $region6: #{tpu_custom_call.1} parent=1 // pred_check
      _
    $region7: #{tpu_custom_call.1} parent=1 // pred_check_branch
      %13 = sbr.rel (0) target = $region9
    $region8: #{tpu_custom_call.1} parent=1 // pred_region
      _
    $region9: #{tpu_custom_call.1} parent=1 // pred_fallthru
      _
    // Predicated region
    $region10: #{tpu_custom_call.1} parent=1 // pred_check
      _
    $region11: #{tpu_custom_call.1} parent=1 // pred_check_branch
      %15 = sbr.rel (0) target = $region13
    $region12: #{tpu_custom_call.1} parent=1 // pred_region
      _
    $region13: #{tpu_custom_call.1} parent=1 // pred_fallthru
      _
    // Predicated region
    $region14: #{tpu_custom_call.1} parent=1 // pred_check
      _
    $region15: #{tpu_custom_call.1} parent=1 // pred_check_branch
      %17 = sbr.rel (0) target = $region17
    $region16: #{tpu_custom_call.1} parent=1 // pred_region
      _
    $region17: #{tpu_custom_call.1} parent=1 // pred_fallthru
      _
    %v18 = vld [vmem:[%s0] sm:$0xff]
    %v19 = vld [vmem:[%s0 + $0x8] sm:$0xff]
    %v20 = vld [vmem:[%s0 + $0x10] sm:$0xff]
    %v21 = vld [vmem:[%s0 + $0x18] sm:$0xff]
    %v22 = vld [vmem:[%s1] sm:$0xff]
    %v23 = vld [vmem:[%s1 + $0x8] sm:$0xff]
    %v24 = vld [vmem:[%s1 + $0x10] sm:$0xff]
    %v25 = vld [vmem:[%s1 + $0x18] sm:$0xff]
    %v26 = vmul.f32 %v18, %v19
    %v27 = vmul.f32 %v19, %v20
    %v28 = vmul.f32 %v20, %v21
    %v29 = vmul.f32 %v21, %v18
    %v30 = vrot.slane %v26, 4
    %v31 = vadd.f32 %v26, %v30
    %v32 = vrot.slane %v31, 2
    %v33 = vadd.f32 %v31, %v32
    %v34 = vrot.slane %v33, 1
    %v35 = vadd.f32 %v33, %v34
    %v36 = vrot.slane %v27, 4
    %v37 = vadd.f32 %v27, %v36
    %v38 = vrot.slane %v37, 2
    %v39 = vadd.f32 %v37, %v38
    %v40 = vrot.slane %v39, 1
    %v41 = vadd.f32 %v39, %v40
    %v42 = vrot.slane %v28, 4
    %v43 = vadd.f32 %v28, %v42
    %v44 = vrot.slane %v43, 2
    %v45 = vadd.f32 %v43, %v44
    %v46 = vrot.slane %v45, 1
    %v47 = vadd.f32 %v45, %v46
    %v48 = vrot.slane %v29, 4
    %v49 = vadd.f32 %v29, %v48
    %v50 = vrot.slane %v49, 2
    %v51 = vadd.f32 %v49, %v50
    %v52 = vrot.slane %v51, 1
    %v53 = vadd.f32 %v51, %v52
    %v54 = vmul.f32 %v18, %v20
    %v55 = vmul.f32 %v19, %v21
    %v56 = vrot.slane %v54, 4
    %v57 = vadd.f32 %v54, %v56
    %v58 = vrot.slane %v57, 2
    %v59 = vadd.f32 %v57, %v58
    %v60 = vrot.slane %v59, 1
    %v61 = vadd.f32 %v59, %v60
    %v62 = vrot.slane %v55, 4
    %v63 = vadd.f32 %v55, %v62
    %v64 = vrot.slane %v63, 2
    %v65 = vadd.f32 %v63, %v64
    %v66 = vrot.slane %v65, 1
    %v67 = vadd.f32 %v65, %v66
    %vm72 = vcmask 1041409
    %v73 = vsel %vm72, %v41, %v35
    %vm74 = vcmask 1042434
    %v75 = vsel %vm74, %v47, %v73
    %vm76 = vcmask 1043459
    %v77 = vsel %vm76, %v53, %v75
    %vm81 = vcmask 1045509
    %v82 = vsel %vm81, %v67, %v61
    %vm83 = vcmask 1046534
    %v84 = vsel %vm83, %v61, %v82
    %vm85 = vcmask 1047559
    %v86 = vsel %vm85, %v67, %v84
    %vm88 = vcmask 1043456
    %v89 = vsel %vm88, %v77, %v86
    %v90 = vld [vmem:[%s2] sm:$0xff]
    %v91 = vld [vmem:[%s2 + $0x8] sm:$0xff]
    %v92 = vld [vmem:[%s2 + $0x10] sm:$0xff]
    %v93 = vld [vmem:[%s2 + $0x18] sm:$0xff]
    %vm94 = vcmask 64512
    %v96 = vsel %vm94, %v90, 0
    %v99 = vsel %vm94, %v91, 0
    %v102 = vsel %vm94, %v92, 0
    %v105 = vsel %vm94, %v93, 0
    %107 = vmatprep.subr.mxu0 0.0
    %108 = vmatpush1.msra.mxu0 %v89
    %109 = vmatprep.subr.mxu0 0.0
    %110 = vmatpush1.msra.mxu0 0.0
    %111 = vmatprep.subr.mxu0 0.0
    %112 = vmatpush1.msra.mxu0 0.0
    %113 = vmatprep.subr.mxu0 0.0
    %114 = vmatpush1.msra.mxu0 0.0
    %115 = vmatprep.subr.mxu0 0.0
    %116 = vmatpush1.msra.mxu0 0.0
    %117 = vmatprep.subr.mxu0 0.0
    %118 = vmatpush1.msra.mxu0 0.0
    %119 = vmatprep.subr.mxu0 0.0
    %120 = vmatpush1.msra.mxu0 0.0
    %121 = vmatprep.subr.mxu0 0.0
    %122 = vmatpush1.msra.mxu0 0.0
    %123 = vmatprep.subr.mxu0 0.0
    %124 = vmatpush1.msra.mxu0 0.0
    %125 = vmatprep.subr.mxu0 0.0
    %126 = vmatpush1.msra.mxu0 0.0
    %127 = vmatprep.subr.mxu0 0.0
    %128 = vmatpush1.msra.mxu0 0.0
    %129 = vmatprep.subr.mxu0 0.0
    %130 = vmatpush1.msra.mxu0 0.0
    %131 = vmatprep.subr.mxu0 0.0
    %132 = vmatpush1.msra.mxu0 0.0
    %133 = vmatprep.subr.mxu0 0.0
    %134 = vmatpush1.msra.mxu0 0.0
    %135 = vmatprep.subr.mxu0 0.0
    %136 = vmatpush1.msra.mxu0 0.0
    %137 = vmatprep.subr.mxu0 0.0
    %138 = vmatpush1.msra.mxu0 0.0
    %139 = vmatprep.subr.mxu0 0.0
    %140 = vmatpush1.msra.mxu0 0.0
    %141 = vmatprep.subr.mxu0 0.0
    %142 = vmatpush1.msra.mxu0 0.0
    %143 = vmatprep.subr.mxu0 0.0
    %144 = vmatpush1.msra.mxu0 0.0
    %145 = vmatprep.subr.mxu0 0.0
    %146 = vmatpush1.msra.mxu0 0.0
    %147 = vmatprep.subr.mxu0 0.0
    %148 = vmatpush1.msra.mxu0 0.0
    %149 = vmatprep.subr.mxu0 0.0
    %150 = vmatpush1.msra.mxu0 0.0
    %151 = vmatprep.subr.mxu0 0.0
    %152 = vmatpush1.msra.mxu0 0.0
    %153 = vmatprep.subr.mxu0 0.0
    %154 = vmatpush1.msra.mxu0 0.0
    %155 = vmatprep.subr.mxu0 0.0
    %156 = vmatpush1.msra.mxu0 0.0
    %157 = vmatprep.subr.mxu0 0.0
    %158 = vmatpush1.msra.mxu0 0.0
    %159 = vmatprep.subr.mxu0 0.0
    %160 = vmatpush1.msra.mxu0 0.0
    %161 = vmatprep.subr.mxu0 0.0
    %162 = vmatpush1.msra.mxu0 0.0
    %163 = vmatprep.subr.mxu0 0.0
    %164 = vmatpush1.msra.mxu0 0.0
    %165 = vmatprep.subr.mxu0 0.0
    %166 = vmatpush1.msra.mxu0 0.0
    %167 = vmatprep.subr.mxu0 0.0
    %168 = vmatpush1.msra.mxu0 0.0
    %169 = vmatprep.subr.mxu0 0.0
    %170 = vmatpush1.msra.mxu0 0.0
    %171 = vmatprep.mubr.f32.mxu0 0.0
    %172 = vmatmul.mubr.f32.gmra.mrb[0].mxu0 %v96
    %v173 = vpop.f32.mrb[0].mxu0
    %v174 = vadd.f32 0.0, %v173
    %v175 = vpop.f32.mrb[0].mxu0
    %176 = vmatprep.mubr.f32.mxu0 0.0
    %177 = vmatmul.mubr.f32.gmra.mrb[0].mxu0 %v99
    %v178 = vpop.f32.mrb[0].mxu0
    %v179 = vadd.f32 0.0, %v178
    %v180 = vpop.f32.mrb[0].mxu0
    %181 = vmatprep.mubr.f32.mxu0 0.0
    %182 = vmatmul.mubr.f32.gmra.mrb[0].mxu0 %v102
    %v183 = vpop.f32.mrb[0].mxu0
    %v184 = vadd.f32 0.0, %v183
    %v185 = vpop.f32.mrb[0].mxu0
    %186 = vmatprep.mubr.f32.mxu0 0.0
    %187 = vmatmul.mubr.f32.gmra.mrb[0].mxu0 %v105
    %v188 = vpop.f32.mrb[0].mxu0
    %v189 = vadd.f32 0.0, %v188
    %v190 = vpop.f32.mrb[0].mxu0
    %191 = vdwg.mxu0
    %vm192 = vcmask 261120
    %v194 = vsel %vm192, %v22, 0
    %v197 = vsel %vm192, %v23, 0
    %v200 = vsel %vm192, %v24, 0
    %v203 = vsel %vm192, %v25, 0
    %205 = vmatprep.subr.mxu0 0.0
    %206 = vmatpush1.msra.mxu0 %v18
    %207 = vmatprep.subr.mxu0 0.0
    %208 = vmatpush1.msra.mxu0 %v19
    %209 = vmatprep.subr.mxu0 0.0
    %210 = vmatpush1.msra.mxu0 %v20
    %211 = vmatprep.subr.mxu0 0.0
    %212 = vmatpush1.msra.mxu0 %v21
    %213 = vmatprep.subr.mxu0 0.0
    %214 = vmatpush1.msra.mxu0 0.0
    %215 = vmatprep.subr.mxu0 0.0
    %216 = vmatpush1.msra.mxu0 0.0
    %217 = vmatprep.subr.mxu0 0.0
    %218 = vmatpush1.msra.mxu0 0.0
    %219 = vmatprep.subr.mxu0 0.0
    %220 = vmatpush1.msra.mxu0 0.0
    %221 = vmatprep.subr.mxu0 0.0
    %222 = vmatpush1.msra.mxu0 0.0
    %223 = vmatprep.subr.mxu0 0.0
    %224 = vmatpush1.msra.mxu0 0.0
    %225 = vmatprep.subr.mxu0 0.0
    %226 = vmatpush1.msra.mxu0 0.0
    %227 = vmatprep.subr.mxu0 0.0
    %228 = vmatpush1.msra.mxu0 0.0
    %229 = vmatprep.subr.mxu0 0.0
    %230 = vmatpush1.msra.mxu0 0.0
    %231 = vmatprep.subr.mxu0 0.0
    %232 = vmatpush1.msra.mxu0 0.0
    %233 = vmatprep.subr.mxu0 0.0
    %234 = vmatpush1.msra.mxu0 0.0
    %235 = vmatprep.subr.mxu0 0.0
    %236 = vmatpush1.msra.mxu0 0.0
    %237 = vmatprep.subr.mxu0 0.0
    %238 = vmatpush1.msra.mxu0 0.0
    %239 = vmatprep.subr.mxu0 0.0
    %240 = vmatpush1.msra.mxu0 0.0
    %241 = vmatprep.subr.mxu0 0.0
    %242 = vmatpush1.msra.mxu0 0.0
    %243 = vmatprep.subr.mxu0 0.0
    %244 = vmatpush1.msra.mxu0 0.0
    %245 = vmatprep.subr.mxu0 0.0
    %246 = vmatpush1.msra.mxu0 0.0
    %247 = vmatprep.subr.mxu0 0.0
    %248 = vmatpush1.msra.mxu0 0.0
    %249 = vmatprep.subr.mxu0 0.0
    %250 = vmatpush1.msra.mxu0 0.0
    %251 = vmatprep.subr.mxu0 0.0
    %252 = vmatpush1.msra.mxu0 0.0
    %253 = vmatprep.subr.mxu0 0.0
    %254 = vmatpush1.msra.mxu0 0.0
    %255 = vmatprep.subr.mxu0 0.0
    %256 = vmatpush1.msra.mxu0 0.0
    %257 = vmatprep.subr.mxu0 0.0
    %258 = vmatpush1.msra.mxu0 0.0
    %259 = vmatprep.subr.mxu0 0.0
    %260 = vmatpush1.msra.mxu0 0.0
    %261 = vmatprep.subr.mxu0 0.0
    %262 = vmatpush1.msra.mxu0 0.0
    %263 = vmatprep.subr.mxu0 0.0
    %264 = vmatpush1.msra.mxu0 0.0
    %265 = vmatprep.subr.mxu0 0.0
    %266 = vmatpush1.msra.mxu0 0.0
    %267 = vmatprep.subr.mxu0 0.0
    %268 = vmatpush1.msra.mxu0 0.0
    %269 = vmatprep.mubr.f32.mxu0 0.0
    %270 = vmatmul.mubr.f32.gmra.mrb[0].mxu0 %v194
    %v271 = vpop.f32.mrb[0].mxu0
    %v272 = vadd.f32 %v174, %v271
    %v273 = vpop.f32.mrb[0].mxu0
    %274 = vmatprep.mubr.f32.mxu0 0.0
    %275 = vmatmul.mubr.f32.gmra.mrb[0].mxu0 %v197
    %v276 = vpop.f32.mrb[0].mxu0
    %v277 = vadd.f32 %v179, %v276
    %v278 = vpop.f32.mrb[0].mxu0
    %279 = vmatprep.mubr.f32.mxu0 0.0
    %280 = vmatmul.mubr.f32.gmra.mrb[0].mxu0 %v200
    %v281 = vpop.f32.mrb[0].mxu0
    %v282 = vadd.f32 %v184, %v281
    %v283 = vpop.f32.mrb[0].mxu0
    %284 = vmatprep.mubr.f32.mxu0 0.0
    %285 = vmatmul.mubr.f32.gmra.mrb[0].mxu0 %v203
    %v286 = vpop.f32.mrb[0].mxu0
    %v287 = vadd.f32 %v189, %v286
    %v288 = vpop.f32.mrb[0].mxu0
    %289 = vdwg.mxu0
    %v290 = vld [vmem:[%s3] sm:$0xff]
    %v291 = vld [vmem:[%s3 + $0x8] sm:$0xff]
    %v292 = vld [vmem:[%s3 + $0x10] sm:$0xff]
    %v293 = vld [vmem:[%s3 + $0x18] sm:$0xff]
    %295 = vset.pattern.permute.xlu0 0
    %296 = vperm.xlu0 %295, %v290
    %v297 = vpop.permute.xlu0 %296
    %300 = vset.pattern.permute.xlu0 0
    %301 = vperm.xlu0 %300, %v291
    %v302 = vpop.permute.xlu0 %301
    %305 = vset.pattern.permute.xlu0 0
    %306 = vperm.xlu0 %305, %v292
    %v307 = vpop.permute.xlu0 %306
    %310 = vset.pattern.permute.xlu0 0
    %311 = vperm.xlu0 %310, %v293
    %v312 = vpop.permute.xlu0 %311
    %v314 = vadd.f32 %v272, %v297
    %v315 = vadd.f32 %v277, %v302
    %v316 = vadd.f32 %v282, %v307
    %v317 = vadd.f32 %v287, %v312
    %v318 = vmax.f32 %v314, 0.0
    %v319 = vmax.f32 %v315, 0.0
    %v320 = vmax.f32 %v316, 0.0
    %v321 = vmax.f32 %v317, 0.0
    %s322 = scalar_lea.vmem %s1, 32
    %v323 = vld [vmem:[%s322] sm:$0xff]
    %v324 = vld [vmem:[%s322 + $0x8] sm:$0xff]
    %v325 = vld [vmem:[%s322 + $0x10] sm:$0xff]
    %v326 = vld [vmem:[%s322 + $0x18] sm:$0xff]
    %v327 = vmul.f32 %v318, %v319
    %v328 = vmul.f32 %v319, %v320
    %v329 = vmul.f32 %v320, %v321
    %v330 = vmul.f32 %v321, %v318
    %v331 = vrot.slane %v327, 4
    %v332 = vadd.f32 %v327, %v331
    %v333 = vrot.slane %v332, 2
    %v334 = vadd.f32 %v332, %v333
    %v335 = vrot.slane %v334, 1
    %v336 = vadd.f32 %v334, %v335
    %v337 = vrot.slane %v328, 4
    %v338 = vadd.f32 %v328, %v337
    %v339 = vrot.slane %v338, 2
    %v340 = vadd.f32 %v338, %v339
    %v341 = vrot.slane %v340, 1
    %v342 = vadd.f32 %v340, %v341
    %v343 = vrot.slane %v329, 4
    %v344 = vadd.f32 %v329, %v343
    %v345 = vrot.slane %v344, 2
    %v346 = vadd.f32 %v344, %v345
    %v347 = vrot.slane %v346, 1
    %v348 = vadd.f32 %v346, %v347
    %v349 = vrot.slane %v330, 4
    %v350 = vadd.f32 %v330, %v349
    %v351 = vrot.slane %v350, 2
    %v352 = vadd.f32 %v350, %v351
    %v353 = vrot.slane %v352, 1
    %v354 = vadd.f32 %v352, %v353
    %v355 = vmul.f32 %v318, %v320
    %v356 = vmul.f32 %v319, %v321
    %v357 = vrot.slane %v355, 4
    %v358 = vadd.f32 %v355, %v357
    %v359 = vrot.slane %v358, 2
    %v360 = vadd.f32 %v358, %v359
    %v361 = vrot.slane %v360, 1
    %v362 = vadd.f32 %v360, %v361
    %v363 = vrot.slane %v356, 4
    %v364 = vadd.f32 %v356, %v363
    %v365 = vrot.slane %v364, 2
    %v366 = vadd.f32 %v364, %v365
    %v367 = vrot.slane %v366, 1
    %v368 = vadd.f32 %v366, %v367
    %v373 = vsel %vm72, %v342, %v336
    %v374 = vsel %vm74, %v348, %v373
    %v375 = vsel %vm76, %v354, %v374
    %v379 = vsel %vm81, %v368, %v362
    %v380 = vsel %vm83, %v362, %v379
    %v381 = vsel %vm85, %v368, %v380
    %v383 = vsel %vm88, %v375, %v381
    %s384 = scalar_lea.vmem %s2, 32
    %v385 = vld [vmem:[%s384] sm:$0xff]
    %v386 = vld [vmem:[%s384 + $0x8] sm:$0xff]
    %v387 = vld [vmem:[%s384 + $0x10] sm:$0xff]
    %v388 = vld [vmem:[%s384 + $0x18] sm:$0xff]
    %v390 = vsel %vm94, %v385, 0
    %v393 = vsel %vm94, %v386, 0
    %v396 = vsel %vm94, %v387, 0
    %v399 = vsel %vm94, %v388, 0
    %401 = vmatprep.subr.mxu0 0.0
    %402 = vmatpush1.msra.mxu0 %v383
    %403 = vmatprep.subr.mxu0 0.0
    %404 = vmatpush1.msra.mxu0 0.0
    %405 = vmatprep.subr.mxu0 0.0
    %406 = vmatpush1.msra.mxu0 0.0
    %407 = vmatprep.subr.mxu0 0.0
    %408 = vmatpush1.msra.mxu0 0.0
    %409 = vmatprep.subr.mxu0 0.0
    %410 = vmatpush1.msra.mxu0 0.0
    %411 = vmatprep.subr.mxu0 0.0
    %412 = vmatpush1.msra.mxu0 0.0
    %413 = vmatprep.subr.mxu0 0.0
    %414 = vmatpush1.msra.mxu0 0.0
    %415 = vmatprep.subr.mxu0 0.0
    %416 = vmatpush1.msra.mxu0 0.0
    %417 = vmatprep.subr.mxu0 0.0
    %418 = vmatpush1.msra.mxu0 0.0
    %419 = vmatprep.subr.mxu0 0.0
    %420 = vmatpush1.msra.mxu0 0.0
    %421 = vmatprep.subr.mxu0 0.0
    %422 = vmatpush1.msra.mxu0 0.0
    %423 = vmatprep.subr.mxu0 0.0
    %424 = vmatpush1.msra.mxu0 0.0
    %425 = vmatprep.subr.mxu0 0.0
    %426 = vmatpush1.msra.mxu0 0.0
    %427 = vmatprep.subr.mxu0 0.0
    %428 = vmatpush1.msra.mxu0 0.0
    %429 = vmatprep.subr.mxu0 0.0
    %430 = vmatpush1.msra.mxu0 0.0
    %431 = vmatprep.subr.mxu0 0.0
    %432 = vmatpush1.msra.mxu0 0.0
    %433 = vmatprep.subr.mxu0 0.0
    %434 = vmatpush1.msra.mxu0 0.0
    %435 = vmatprep.subr.mxu0 0.0
    %436 = vmatpush1.msra.mxu0 0.0
    %437 = vmatprep.subr.mxu0 0.0
    %438 = vmatpush1.msra.mxu0 0.0
    %439 = vmatprep.subr.mxu0 0.0
    %440 = vmatpush1.msra.mxu0 0.0
    %441 = vmatprep.subr.mxu0 0.0
    %442 = vmatpush1.msra.mxu0 0.0
    %443 = vmatprep.subr.mxu0 0.0
    %444 = vmatpush1.msra.mxu0 0.0
    %445 = vmatprep.subr.mxu0 0.0
    %446 = vmatpush1.msra.mxu0 0.0
    %447 = vmatprep.subr.mxu0 0.0
    %448 = vmatpush1.msra.mxu0 0.0
    %449 = vmatprep.subr.mxu0 0.0
    %450 = vmatpush1.msra.mxu0 0.0
    %451 = vmatprep.subr.mxu0 0.0
    %452 = vmatpush1.msra.mxu0 0.0
    %453 = vmatprep.subr.mxu0 0.0
    %454 = vmatpush1.msra.mxu0 0.0
    %455 = vmatprep.subr.mxu0 0.0
    %456 = vmatpush1.msra.mxu0 0.0
    %457 = vmatprep.subr.mxu0 0.0
    %458 = vmatpush1.msra.mxu0 0.0
    %459 = vmatprep.subr.mxu0 0.0
    %460 = vmatpush1.msra.mxu0 0.0
    %461 = vmatprep.subr.mxu0 0.0
    %462 = vmatpush1.msra.mxu0 0.0
    %463 = vmatprep.subr.mxu0 0.0
    %464 = vmatpush1.msra.mxu0 0.0
    %465 = vmatprep.mubr.f32.mxu0 0.0
    %466 = vmatmul.mubr.f32.gmra.mrb[0].mxu0 %v390
    %v467 = vpop.f32.mrb[0].mxu0
    %v468 = vadd.f32 0.0, %v467
    %v469 = vpop.f32.mrb[0].mxu0
    %470 = vmatprep.mubr.f32.mxu0 0.0
    %471 = vmatmul.mubr.f32.gmra.mrb[0].mxu0 %v393
    %v472 = vpop.f32.mrb[0].mxu0
    %v473 = vadd.f32 0.0, %v472
    %v474 = vpop.f32.mrb[0].mxu0
    %475 = vmatprep.mubr.f32.mxu0 0.0
    %476 = vmatmul.mubr.f32.gmra.mrb[0].mxu0 %v396
    %v477 = vpop.f32.mrb[0].mxu0
    %v478 = vadd.f32 0.0, %v477
    %v479 = vpop.f32.mrb[0].mxu0
    %480 = vmatprep.mubr.f32.mxu0 0.0
    %481 = vmatmul.mubr.f32.gmra.mrb[0].mxu0 %v399
    %v482 = vpop.f32.mrb[0].mxu0
    %v483 = vadd.f32 0.0, %v482
    %v484 = vpop.f32.mrb[0].mxu0
    %485 = vdwg.mxu0
    %v487 = vsel %vm192, %v323, 0
    %v490 = vsel %vm192, %v324, 0
    %v493 = vsel %vm192, %v325, 0
    %v496 = vsel %vm192, %v326, 0
    %498 = vmatprep.subr.mxu0 0.0
    %499 = vmatpush1.msra.mxu0 %v318
    %500 = vmatprep.subr.mxu0 0.0
    %501 = vmatpush1.msra.mxu0 %v319
    %502 = vmatprep.subr.mxu0 0.0
    %503 = vmatpush1.msra.mxu0 %v320
    %504 = vmatprep.subr.mxu0 0.0
    %505 = vmatpush1.msra.mxu0 %v321
    %506 = vmatprep.subr.mxu0 0.0
    %507 = vmatpush1.msra.mxu0 0.0
    %508 = vmatprep.subr.mxu0 0.0
    %509 = vmatpush1.msra.mxu0 0.0
    %510 = vmatprep.subr.mxu0 0.0
    %511 = vmatpush1.msra.mxu0 0.0
    %512 = vmatprep.subr.mxu0 0.0
    %513 = vmatpush1.msra.mxu0 0.0
    %514 = vmatprep.subr.mxu0 0.0
    %515 = vmatpush1.msra.mxu0 0.0
    %516 = vmatprep.subr.mxu0 0.0
    %517 = vmatpush1.msra.mxu0 0.0
    %518 = vmatprep.subr.mxu0 0.0
    %519 = vmatpush1.msra.mxu0 0.0
    %520 = vmatprep.subr.mxu0 0.0
    %521 = vmatpush1.msra.mxu0 0.0
    %522 = vmatprep.subr.mxu0 0.0
    %523 = vmatpush1.msra.mxu0 0.0
    %524 = vmatprep.subr.mxu0 0.0
    %525 = vmatpush1.msra.mxu0 0.0
    %526 = vmatprep.subr.mxu0 0.0
    %527 = vmatpush1.msra.mxu0 0.0
    %528 = vmatprep.subr.mxu0 0.0
    %529 = vmatpush1.msra.mxu0 0.0
    %530 = vmatprep.subr.mxu0 0.0
    %531 = vmatpush1.msra.mxu0 0.0
    %532 = vmatprep.subr.mxu0 0.0
    %533 = vmatpush1.msra.mxu0 0.0
    %534 = vmatprep.subr.mxu0 0.0
    %535 = vmatpush1.msra.mxu0 0.0
    %536 = vmatprep.subr.mxu0 0.0
    %537 = vmatpush1.msra.mxu0 0.0
    %538 = vmatprep.subr.mxu0 0.0
    %539 = vmatpush1.msra.mxu0 0.0
    %540 = vmatprep.subr.mxu0 0.0
    %541 = vmatpush1.msra.mxu0 0.0
    %542 = vmatprep.subr.mxu0 0.0
    %543 = vmatpush1.msra.mxu0 0.0
    %544 = vmatprep.subr.mxu0 0.0
    %545 = vmatpush1.msra.mxu0 0.0
    %546 = vmatprep.subr.mxu0 0.0
    %547 = vmatpush1.msra.mxu0 0.0
    %548 = vmatprep.subr.mxu0 0.0
    %549 = vmatpush1.msra.mxu0 0.0
    %550 = vmatprep.subr.mxu0 0.0
    %551 = vmatpush1.msra.mxu0 0.0
    %552 = vmatprep.subr.mxu0 0.0
    %553 = vmatpush1.msra.mxu0 0.0
    %554 = vmatprep.subr.mxu0 0.0
    %555 = vmatpush1.msra.mxu0 0.0
    %556 = vmatprep.subr.mxu0 0.0
    %557 = vmatpush1.msra.mxu0 0.0
    %558 = vmatprep.subr.mxu0 0.0
    %559 = vmatpush1.msra.mxu0 0.0
    %560 = vmatprep.subr.mxu0 0.0
    %561 = vmatpush1.msra.mxu0 0.0
    %562 = vmatprep.mubr.f32.mxu0 0.0
    %563 = vmatmul.mubr.f32.gmra.mrb[0].mxu0 %v487
    %v564 = vpop.f32.mrb[0].mxu0
    %v565 = vadd.f32 %v468, %v564
    %v566 = vpop.f32.mrb[0].mxu0
    %567 = vmatprep.mubr.f32.mxu0 0.0
    %568 = vmatmul.mubr.f32.gmra.mrb[0].mxu0 %v490
    %v569 = vpop.f32.mrb[0].mxu0
    %v570 = vadd.f32 %v473, %v569
    %v571 = vpop.f32.mrb[0].mxu0
    %572 = vmatprep.mubr.f32.mxu0 0.0
    %573 = vmatmul.mubr.f32.gmra.mrb[0].mxu0 %v493
    %v574 = vpop.f32.mrb[0].mxu0
    %v575 = vadd.f32 %v478, %v574
    %v576 = vpop.f32.mrb[0].mxu0
    %577 = vmatprep.mubr.f32.mxu0 0.0
    %578 = vmatmul.mubr.f32.gmra.mrb[0].mxu0 %v496
    %v579 = vpop.f32.mrb[0].mxu0
    %v580 = vadd.f32 %v483, %v579
    %v581 = vpop.f32.mrb[0].mxu0
    %582 = vdwg.mxu0
    %s583 = scalar_lea.vmem %s3, 32
    %v584 = vld [vmem:[%s583] sm:$0xff]
    %v585 = vld [vmem:[%s583 + $0x8] sm:$0xff]
    %v586 = vld [vmem:[%s583 + $0x10] sm:$0xff]
    %v587 = vld [vmem:[%s583 + $0x18] sm:$0xff]
    %589 = vset.pattern.permute.xlu0 0
    %590 = vperm.xlu0 %589, %v584
    %v591 = vpop.permute.xlu0 %590
    %594 = vset.pattern.permute.xlu0 0
    %595 = vperm.xlu0 %594, %v585
    %v596 = vpop.permute.xlu0 %595
    %599 = vset.pattern.permute.xlu0 0
    %600 = vperm.xlu0 %599, %v586
    %v601 = vpop.permute.xlu0 %600
    %604 = vset.pattern.permute.xlu0 0
    %605 = vperm.xlu0 %604, %v587
    %v606 = vpop.permute.xlu0 %605
    %v608 = vadd.f32 %v565, %v591
    %v609 = vadd.f32 %v570, %v596
    %v610 = vadd.f32 %v575, %v601
    %v611 = vadd.f32 %v580, %v606
    %v612 = vmax.f32 %v608, 0.0
    %v613 = vmax.f32 %v609, 0.0
    %v614 = vmax.f32 %v610, 0.0
    %v615 = vmax.f32 %v611, 0.0
    %s616 = scalar_lea.vmem %s1, 64
    %v617 = vld [vmem:[%s616] sm:$0xff]
    %v618 = vld [vmem:[%s616 + $0x8] sm:$0xff]
    %v619 = vld [vmem:[%s616 + $0x10] sm:$0xff]
    %v620 = vld [vmem:[%s616 + $0x18] sm:$0xff]
    %v621 = vmul.f32 %v612, %v613
    %v622 = vmul.f32 %v613, %v614
    %v623 = vmul.f32 %v614, %v615
    %v624 = vmul.f32 %v615, %v612
    %v625 = vrot.slane %v621, 4
    %v626 = vadd.f32 %v621, %v625
    %v627 = vrot.slane %v626, 2
    %v628 = vadd.f32 %v626, %v627
    %v629 = vrot.slane %v628, 1
    %v630 = vadd.f32 %v628, %v629
    %v631 = vrot.slane %v622, 4
    %v632 = vadd.f32 %v622, %v631
    %v633 = vrot.slane %v632, 2
    %v634 = vadd.f32 %v632, %v633
    %v635 = vrot.slane %v634, 1
    %v636 = vadd.f32 %v634, %v635
    %v637 = vrot.slane %v623, 4
    %v638 = vadd.f32 %v623, %v637
    %v639 = vrot.slane %v638, 2
    %v640 = vadd.f32 %v638, %v639
    %v641 = vrot.slane %v640, 1
    %v642 = vadd.f32 %v640, %v641
    %v643 = vrot.slane %v624, 4
    %v644 = vadd.f32 %v624, %v643
    %v645 = vrot.slane %v644, 2
    %v646 = vadd.f32 %v644, %v645
    %v647 = vrot.slane %v646, 1
    %v648 = vadd.f32 %v646, %v647
    %v649 = vmul.f32 %v612, %v614
    %v650 = vmul.f32 %v613, %v615
    %v651 = vrot.slane %v649, 4
    %v652 = vadd.f32 %v649, %v651
    %v653 = vrot.slane %v652, 2
    %v654 = vadd.f32 %v652, %v653
    %v655 = vrot.slane %v654, 1
    %v656 = vadd.f32 %v654, %v655
    %v657 = vrot.slane %v650, 4
    %v658 = vadd.f32 %v650, %v657
    %v659 = vrot.slane %v658, 2
    %v660 = vadd.f32 %v658, %v659
    %v661 = vrot.slane %v660, 1
    %v662 = vadd.f32 %v660, %v661
    %v667 = vsel %vm72, %v636, %v630
    %v668 = vsel %vm74, %v642, %v667
    %v669 = vsel %vm76, %v648, %v668
    %v673 = vsel %vm81, %v662, %v656
    %v674 = vsel %vm83, %v656, %v673
    %v675 = vsel %vm85, %v662, %v674
    %v677 = vsel %vm88, %v669, %v675
    %s678 = scalar_lea.vmem %s2, 64
    %v679 = vld [vmem:[%s678] sm:$0xff]
    %v680 = vld [vmem:[%s678 + $0x8] sm:$0xff]
    %v681 = vld [vmem:[%s678 + $0x10] sm:$0xff]
    %v682 = vld [vmem:[%s678 + $0x18] sm:$0xff]
    %v684 = vsel %vm94, %v679, 0
    %v687 = vsel %vm94, %v680, 0
    %v690 = vsel %vm94, %v681, 0
    %v693 = vsel %vm94, %v682, 0
    %695 = vmatprep.subr.mxu0 0.0
    %696 = vmatpush1.msra.mxu0 %v677
    %697 = vmatprep.subr.mxu0 0.0
    %698 = vmatpush1.msra.mxu0 0.0
    %699 = vmatprep.subr.mxu0 0.0
    %700 = vmatpush1.msra.mxu0 0.0
    %701 = vmatprep.subr.mxu0 0.0
    %702 = vmatpush1.msra.mxu0 0.0
    %703 = vmatprep.subr.mxu0 0.0
    %704 = vmatpush1.msra.mxu0 0.0
    %705 = vmatprep.subr.mxu0 0.0
    %706 = vmatpush1.msra.mxu0 0.0
    %707 = vmatprep.subr.mxu0 0.0
    %708 = vmatpush1.msra.mxu0 0.0
    %709 = vmatprep.subr.mxu0 0.0
    %710 = vmatpush1.msra.mxu0 0.0
    %711 = vmatprep.subr.mxu0 0.0
    %712 = vmatpush1.msra.mxu0 0.0
    %713 = vmatprep.subr.mxu0 0.0
    %714 = vmatpush1.msra.mxu0 0.0
    %715 = vmatprep.subr.mxu0 0.0
    %716 = vmatpush1.msra.mxu0 0.0
    %717 = vmatprep.subr.mxu0 0.0
    %718 = vmatpush1.msra.mxu0 0.0
    %719 = vmatprep.subr.mxu0 0.0
    %720 = vmatpush1.msra.mxu0 0.0
    %721 = vmatprep.subr.mxu0 0.0
    %722 = vmatpush1.msra.mxu0 0.0
    %723 = vmatprep.subr.mxu0 0.0
    %724 = vmatpush1.msra.mxu0 0.0
    %725 = vmatprep.subr.mxu0 0.0
    %726 = vmatpush1.msra.mxu0 0.0
    %727 = vmatprep.subr.mxu0 0.0
    %728 = vmatpush1.msra.mxu0 0.0
    %729 = vmatprep.subr.mxu0 0.0
    %730 = vmatpush1.msra.mxu0 0.0
    %731 = vmatprep.subr.mxu0 0.0
    %732 = vmatpush1.msra.mxu0 0.0
    %733 = vmatprep.subr.mxu0 0.0
    %734 = vmatpush1.msra.mxu0 0.0
    %735 = vmatprep.subr.mxu0 0.0
    %736 = vmatpush1.msra.mxu0 0.0
    %737 = vmatprep.subr.mxu0 0.0
    %738 = vmatpush1.msra.mxu0 0.0
    %739 = vmatprep.subr.mxu0 0.0
    %740 = vmatpush1.msra.mxu0 0.0
    %741 = vmatprep.subr.mxu0 0.0
    %742 = vmatpush1.msra.mxu0 0.0
    %743 = vmatprep.subr.mxu0 0.0
    %744 = vmatpush1.msra.mxu0 0.0
    %745 = vmatprep.subr.mxu0 0.0
    %746 = vmatpush1.msra.mxu0 0.0
    %747 = vmatprep.subr.mxu0 0.0
    %748 = vmatpush1.msra.mxu0 0.0
    %749 = vmatprep.subr.mxu0 0.0
    %750 = vmatpush1.msra.mxu0 0.0
    %751 = vmatprep.subr.mxu0 0.0
    %752 = vmatpush1.msra.mxu0 0.0
    %753 = vmatprep.subr.mxu0 0.0
    %754 = vmatpush1.msra.mxu0 0.0
    %755 = vmatprep.subr.mxu0 0.0
    %756 = vmatpush1.msra.mxu0 0.0
    %757 = vmatprep.subr.mxu0 0.0
    %758 = vmatpush1.msra.mxu0 0.0
    %759 = vmatprep.mubr.f32.mxu0 0.0
    %760 = vmatmul.mubr.f32.gmra.mrb[0].mxu0 %v684
    %v761 = vpop.f32.mrb[0].mxu0
    %v762 = vadd.f32 0.0, %v761
    %v763 = vpop.f32.mrb[0].mxu0
    %764 = vmatprep.mubr.f32.mxu0 0.0
    %765 = vmatmul.mubr.f32.gmra.mrb[0].mxu0 %v687
    %v766 = vpop.f32.mrb[0].mxu0
    %v767 = vadd.f32 0.0, %v766
    %v768 = vpop.f32.mrb[0].mxu0
    %769 = vmatprep.mubr.f32.mxu0 0.0
    %770 = vmatmul.mubr.f32.gmra.mrb[0].mxu0 %v690
    %v771 = vpop.f32.mrb[0].mxu0
    %v772 = vadd.f32 0.0, %v771
    %v773 = vpop.f32.mrb[0].mxu0
    %774 = vmatprep.mubr.f32.mxu0 0.0
    %775 = vmatmul.mubr.f32.gmra.mrb[0].mxu0 %v693
    %v776 = vpop.f32.mrb[0].mxu0
    %v777 = vadd.f32 0.0, %v776
    %v778 = vpop.f32.mrb[0].mxu0
    %779 = vdwg.mxu0
    %v781 = vsel %vm192, %v617, 0
    %v784 = vsel %vm192, %v618, 0
    %v787 = vsel %vm192, %v619, 0
    %v790 = vsel %vm192, %v620, 0
    %792 = vmatprep.subr.mxu0 0.0
    %793 = vmatpush1.msra.mxu0 %v612
    %794 = vmatprep.subr.mxu0 0.0
    %795 = vmatpush1.msra.mxu0 %v613
    %796 = vmatprep.subr.mxu0 0.0
    %797 = vmatpush1.msra.mxu0 %v614
    %798 = vmatprep.subr.mxu0 0.0
    %799 = vmatpush1.msra.mxu0 %v615
    %800 = vmatprep.subr.mxu0 0.0
    %801 = vmatpush1.msra.mxu0 0.0
    %802 = vmatprep.subr.mxu0 0.0
    %803 = vmatpush1.msra.mxu0 0.0
    %804 = vmatprep.subr.mxu0 0.0
    %805 = vmatpush1.msra.mxu0 0.0
    %806 = vmatprep.subr.mxu0 0.0
    %807 = vmatpush1.msra.mxu0 0.0
    %808 = vmatprep.subr.mxu0 0.0
    %809 = vmatpush1.msra.mxu0 0.0
    %810 = vmatprep.subr.mxu0 0.0
    %811 = vmatpush1.msra.mxu0 0.0
    %812 = vmatprep.subr.mxu0 0.0
    %813 = vmatpush1.msra.mxu0 0.0
    %814 = vmatprep.subr.mxu0 0.0
    %815 = vmatpush1.msra.mxu0 0.0
    %816 = vmatprep.subr.mxu0 0.0
    %817 = vmatpush1.msra.mxu0 0.0
    %818 = vmatprep.subr.mxu0 0.0
    %819 = vmatpush1.msra.mxu0 0.0
    %820 = vmatprep.subr.mxu0 0.0
    %821 = vmatpush1.msra.mxu0 0.0
    %822 = vmatprep.subr.mxu0 0.0
    %823 = vmatpush1.msra.mxu0 0.0
    %824 = vmatprep.subr.mxu0 0.0
    %825 = vmatpush1.msra.mxu0 0.0
    %826 = vmatprep.subr.mxu0 0.0
    %827 = vmatpush1.msra.mxu0 0.0
    %828 = vmatprep.subr.mxu0 0.0
    %829 = vmatpush1.msra.mxu0 0.0
    %830 = vmatprep.subr.mxu0 0.0
    %831 = vmatpush1.msra.mxu0 0.0
    %832 = vmatprep.subr.mxu0 0.0
    %833 = vmatpush1.msra.mxu0 0.0
    %834 = vmatprep.subr.mxu0 0.0
    %835 = vmatpush1.msra.mxu0 0.0
    %836 = vmatprep.subr.mxu0 0.0
    %837 = vmatpush1.msra.mxu0 0.0
    %838 = vmatprep.subr.mxu0 0.0
    %839 = vmatpush1.msra.mxu0 0.0
    %840 = vmatprep.subr.mxu0 0.0
    %841 = vmatpush1.msra.mxu0 0.0
    %842 = vmatprep.subr.mxu0 0.0
    %843 = vmatpush1.msra.mxu0 0.0
    %844 = vmatprep.subr.mxu0 0.0
    %845 = vmatpush1.msra.mxu0 0.0
    %846 = vmatprep.subr.mxu0 0.0
    %847 = vmatpush1.msra.mxu0 0.0
    %848 = vmatprep.subr.mxu0 0.0
    %849 = vmatpush1.msra.mxu0 0.0
    %850 = vmatprep.subr.mxu0 0.0
    %851 = vmatpush1.msra.mxu0 0.0
    %852 = vmatprep.subr.mxu0 0.0
    %853 = vmatpush1.msra.mxu0 0.0
    %854 = vmatprep.subr.mxu0 0.0
    %855 = vmatpush1.msra.mxu0 0.0
    %856 = vmatprep.mubr.f32.mxu0 0.0
    %857 = vmatmul.mubr.f32.gmra.mrb[0].mxu0 %v781
    %v858 = vpop.f32.mrb[0].mxu0
    %v859 = vadd.f32 %v762, %v858
    %v860 = vpop.f32.mrb[0].mxu0
    %861 = vmatprep.mubr.f32.mxu0 0.0
    %862 = vmatmul.mubr.f32.gmra.mrb[0].mxu0 %v784
    %v863 = vpop.f32.mrb[0].mxu0
    %v864 = vadd.f32 %v767, %v863
    %v865 = vpop.f32.mrb[0].mxu0
    %866 = vmatprep.mubr.f32.mxu0 0.0
    %867 = vmatmul.mubr.f32.gmra.mrb[0].mxu0 %v787
    %v868 = vpop.f32.mrb[0].mxu0
    %v869 = vadd.f32 %v772, %v868
    %v870 = vpop.f32.mrb[0].mxu0
    %871 = vmatprep.mubr.f32.mxu0 0.0
    %872 = vmatmul.mubr.f32.gmra.mrb[0].mxu0 %v790
    %v873 = vpop.f32.mrb[0].mxu0
    %v874 = vadd.f32 %v777, %v873
    %v875 = vpop.f32.mrb[0].mxu0
    %876 = vdwg.mxu0
    %s877 = scalar_lea.vmem %s3, 64
    %v878 = vld [vmem:[%s877] sm:$0xff]
    %v879 = vld [vmem:[%s877 + $0x8] sm:$0xff]
    %v880 = vld [vmem:[%s877 + $0x10] sm:$0xff]
    %v881 = vld [vmem:[%s877 + $0x18] sm:$0xff]
    %883 = vset.pattern.permute.xlu0 0
    %884 = vperm.xlu0 %883, %v878
    %v885 = vpop.permute.xlu0 %884
    %888 = vset.pattern.permute.xlu0 0
    %889 = vperm.xlu0 %888, %v879
    %v890 = vpop.permute.xlu0 %889
    %893 = vset.pattern.permute.xlu0 0
    %894 = vperm.xlu0 %893, %v880
    %v895 = vpop.permute.xlu0 %894
    %898 = vset.pattern.permute.xlu0 0
    %899 = vperm.xlu0 %898, %v881
    %v900 = vpop.permute.xlu0 %899
    %v902 = vadd.f32 %v859, %v885
    %v903 = vadd.f32 %v864, %v890
    %v904 = vadd.f32 %v869, %v895
    %v905 = vadd.f32 %v874, %v900
    %v906 = vmax.f32 %v902, 0.0
    %v907 = vmax.f32 %v903, 0.0
    %v908 = vmax.f32 %v904, 0.0
    %v909 = vmax.f32 %v905, 0.0
    %910 = vst [vmem:[#allocation2] sm:$0xff] %v906
    %911 = vst [vmem:[#allocation2 + $0x8] sm:$0xff] %v907
    %912 = vst [vmem:[#allocation2 + $0x10] sm:$0xff] %v908
    %913 = vst [vmem:[#allocation2 + $0x18] sm:$0xff] %v909
    // Predicated region
    $region18: #{tpu_custom_call.1} parent=1 // pred_check
      _
    $region19: #{tpu_custom_call.1} parent=1 // pred_check_branch
      %915 = sbr.rel (0) target = $region21
    $region20: #{tpu_custom_call.1} parent=1 // pred_region
      %s917 = ssub.s32 512, 512
      %918 = vsyncadd [#allocation3], %s917
      %s919 = sshll.u32 [#allocation2], 4
      %s920 = int_to_ptr.vmem [resolvable:$true] %s919
      %925 = dma.vmem_to_hbm [thread:$0]  %s920, 512, %s4, [#allocation3], 128, 128, 8
    $region21: #{tpu_custom_call.1} parent=1 // pred_fallthru
      _
    // Predicated region
    $region22: #{tpu_custom_call.1} parent=1 // pred_check
      _
    $region23: #{tpu_custom_call.1} parent=1 // pred_check_branch
      %927 = sbr.rel (0) target = $region25
    $region24: #{tpu_custom_call.1} parent=1 // pred_region
      %928 = dma.done [#allocation3], 512
    $region25: #{tpu_custom_call.1} parent=1 // pred_fallthru
      _
    %929 = vsyncpa [#allocation3], 1

</llo_original>
